<compile_context>
chip_gen: v5e
topology: v5e:2x2
jax: 0.10.0
libtpu: 0.0.40
codegen_flags: <defaults>
</compile_context>

<pallas_src>
import jax
import jax.numpy as jnp
from jax.experimental import pallas as pl
from jax.experimental.pallas import tpu as pltpu


def rnn_forward_kernel(x_ref, w_ih_t_ref, w_hh_t_ref, b_rnn_ref,
                       w_lin_t_ref, b_lin_ref, out_ref):
    """Whole forward pass in one kernel.

    x_ref     : (S*B, I)  time-major flattened input
    w_ih_t_ref: (I, H)
    w_hh_t_ref: (H, H)
    b_rnn_ref : (1, H)    == b_ih + b_hh
    w_lin_t_ref:(S*H, O_pad)  (zero-padded to lane-dense O_pad)
    b_lin_ref : (1, O_pad)
    out_ref   : (B, O_pad)
    """
    SB, _ = x_ref.shape
    H = w_hh_t_ref.shape[0]
    B, O_pad = out_ref.shape
    S = SB // B

    w_hh_t = w_hh_t_ref[...]                          # (H, H)

    # Hoisted input projection: one well-shaped matmul for all timesteps,
    # bias folded in once. Result is time-major: rows [t*B, (t+1)*B) are x_t@W.
    xw = (jnp.dot(x_ref[...], w_ih_t_ref[...],
                  preferred_element_type=jnp.float32)
          + b_rnn_ref[...])                           # (S*B, H)

    h = jnp.zeros((B, H), jnp.float32)
    acc = jnp.zeros((B, O_pad), jnp.float32)

    for t in range(S):                                # static unroll over time
        # Serial chain per step: 1 MXU push + 1 add + tanh.
        pre = xw[t * B:(t + 1) * B, :] + jnp.dot(
            h, w_hh_t, preferred_element_type=jnp.float32)
        h = jnp.tanh(pre)
        # Distributed head: acc == concat_t(h_t) @ W_lin^T without the concat.
        acc = acc + jnp.dot(h, w_lin_t_ref[t * H:(t + 1) * H, :],
                            preferred_element_type=jnp.float32)

    out_ref[...] = jax.nn.sigmoid(acc + b_lin_ref[...])


def rnn_forward(x, params):
    """x: (batch, seq_len, input_size) float32. Returns 1-D (batch*num_outputs,)."""
    B, S, I = x.shape
    w_ih, w_hh, b_ih, b_hh, w_lin, b_lin = params
    H = w_ih.shape[0]
    O = w_lin.shape[0]
    O_pad = max(128, ((O + 127) // 128) * 128)        # lane-dense output width

    # Glue (all cheap wrapper-side layout plumbing):
    #  - time-major flatten of x so the kernel only does one dense matmul on it
    #  - pre-transposed weights for row-major x @ W
    #  - the two RNN biases folded into one (1, H) row
    #  - linear weights/bias zero-padded to O_pad lanes
    x_tm = jnp.transpose(x, (1, 0, 2)).reshape(S * B, I)       # (S*B, I)
    w_ih_t = jnp.transpose(w_ih)                               # (I, H)
    w_hh_t = jnp.transpose(w_hh)                               # (H, H)
    b_rnn = (b_ih + b_hh).reshape(1, H)                        # (1, H)
    w_lin_t = jnp.zeros((S * H, O_pad), jnp.float32).at[:, :O].set(
        jnp.transpose(w_lin))                                  # (S*H, O_pad)
    b_lin_pad = jnp.zeros((1, O_pad), jnp.float32).at[:, :O].set(b_lin)

    out_pad = pl.pallas_call(
        rnn_forward_kernel,
        out_shape=jax.ShapeDtypeStruct((B, O_pad), jnp.float32),
        in_specs=[
            pl.BlockSpec(memory_space=pltpu.MemorySpace.VMEM),  # x (time-major)
            pl.BlockSpec(memory_space=pltpu.MemorySpace.VMEM),  # w_ih_t
            pl.BlockSpec(memory_space=pltpu.MemorySpace.VMEM),  # w_hh_t
            pl.BlockSpec(memory_space=pltpu.MemorySpace.VMEM),  # b_rnn
            pl.BlockSpec(memory_space=pltpu.MemorySpace.VMEM),  # w_lin_t (padded)
            pl.BlockSpec(memory_space=pltpu.MemorySpace.VMEM),  # b_lin (padded)
        ],
        out_specs=pl.BlockSpec(memory_space=pltpu.MemorySpace.VMEM),
    )(x_tm, w_ih_t, w_hh_t, b_rnn, w_lin_t, b_lin_pad)

    # Drop the lane padding, then torch.flatten -> 1-D vector.
    return out_pad[:, :O].reshape(-1)


def init_params(key, seq_len, num_outputs, input_size, hidden_size):
    """Deterministic PyTorch-style uniform(-1/sqrt(fan), 1/sqrt(fan)) init."""
    k = jax.random.split(key, 6)
    s_rnn = 1.0 / jnp.sqrt(hidden_size)
    s_lin = 1.0 / jnp.sqrt(seq_len * hidden_size)
    w_ih = jax.random.uniform(k[0], (hidden_size, input_size), jnp.float32, -s_rnn, s_rnn)
    w_hh = jax.random.uniform(k[1], (hidden_size, hidden_size), jnp.float32, -s_rnn, s_rnn)
    b_ih = jax.random.uniform(k[2], (hidden_size,), jnp.float32, -s_rnn, s_rnn)
    b_hh = jax.random.uniform(k[3], (hidden_size,), jnp.float32, -s_rnn, s_rnn)
    w_lin = jax.random.uniform(k[4], (num_outputs, seq_len * hidden_size), jnp.float32, -s_lin, s_lin)
    b_lin = jax.random.uniform(k[5], (num_outputs,), jnp.float32, -s_lin, s_lin)
    return (w_ih, w_hh, b_ih, b_hh, w_lin, b_lin)


if __name__ == "__main__":
    # Small shapes consistent with the module.
    batch, seq_len, input_size, hidden_size, num_outputs = 2, 8, 4, 32, 4

    key = jax.random.PRNGKey(0)
    kx, kp = jax.random.split(key)
    x = jax.random.normal(kx, (batch, seq_len, input_size), jnp.float32)
    params = init_params(kp, seq_len, num_outputs, input_size, hidden_size)

    out = rnn_forward(x, params)
    jax.block_until_ready(out)

    # Pure-JAX reference of the original (concat + single matmul) math.
    w_ih, w_hh, b_ih, b_hh, w_lin, b_lin = params
    h = jnp.zeros((batch, hidden_size), jnp.float32)
    hs = []
    for t in range(seq_len):
        h = jnp.tanh(x[:, t, :] @ w_ih.T + b_ih + h @ w_hh.T + b_hh)
        hs.append(h)
    ref = jax.nn.sigmoid(jnp.concatenate(hs, -1) @ w_lin.T + b_lin).reshape(-1)

    assert out.shape == (batch * num_outputs,)
    assert jnp.allclose(out, ref, atol=1e-5, rtol=1e-5)

    print("KERNEL_OK")
</pallas_src>

<mosaic_0001>
module attributes {stable_mosaic.version = 11 : i64} {
  func.func @rnn_forward_kernel(%arg0: memref<16x4xf32, #tpu.memory_space<vmem>>, %arg1: memref<4x32xf32, #tpu.memory_space<vmem>>, %arg2: memref<32x32xf32, #tpu.memory_space<vmem>>, %arg3: memref<1x32xf32, #tpu.memory_space<vmem>>, %arg4: memref<256x128xf32, #tpu.memory_space<vmem>>, %arg5: memref<1x128xf32, #tpu.memory_space<vmem>>, %arg6: memref<2x128xf32, #tpu.memory_space<vmem>>) attributes {dimension_semantics = [], scalar_prefetch = 0 : i64, scratch_operands = 0 : i64, tpu.core_type = #tpu.core_type<tc>} {
    %c0 = arith.constant 0 : index
    %c0_0 = arith.constant 0 : index
    %0 = vector.load %arg2[%c0, %c0_0] : memref<32x32xf32, #tpu.memory_space<vmem>>, vector<32x32xf32>
    %c0_1 = arith.constant 0 : index
    %c0_2 = arith.constant 0 : index
    %1 = vector.load %arg0[%c0_1, %c0_2] : memref<16x4xf32, #tpu.memory_space<vmem>>, vector<16x4xf32>
    %c0_3 = arith.constant 0 : index
    %c0_4 = arith.constant 0 : index
    %2 = vector.load %arg1[%c0_3, %c0_4] : memref<4x32xf32, #tpu.memory_space<vmem>>, vector<4x32xf32>
    %cst = arith.constant dense<0.000000e+00> : vector<16x32xf32>
    %3 = tpu.matmul %1, %2, %cst {dimension_numbers = #tpu.dot_dimension_numbers<[1], [0], [0], [1], [0, 0, 1, 1], [], []>} : vector<16x4xf32>, vector<4x32xf32>, vector<16x32xf32> -> vector<16x32xf32>
    %c0_5 = arith.constant 0 : index
    %c0_6 = arith.constant 0 : index
    %4 = vector.load %arg3[%c0_5, %c0_6] : memref<1x32xf32, #tpu.memory_space<vmem>>, vector<1x32xf32>
    %5 = vector.broadcast %4 : vector<1x32xf32> to vector<16x32xf32>
    %6 = arith.addf %3, %5 : vector<16x32xf32>
    %cst_7 = arith.constant 0.000000e+00 : f32
    %7 = vector.broadcast %cst_7 : f32 to vector<2x32xf32>
    %cst_8 = arith.constant 0.000000e+00 : f32
    %8 = vector.broadcast %cst_8 : f32 to vector<2x128xf32>
    %9 = vector.extract_strided_slice %6 {offsets = [0, 0], sizes = [2, 32], strides = [1, 1]} : vector<16x32xf32> to vector<2x32xf32>
    %cst_9 = arith.constant dense<0.000000e+00> : vector<2x32xf32>
    %10 = tpu.matmul %7, %0, %cst_9 {dimension_numbers = #tpu.dot_dimension_numbers<[1], [0], [0], [1], [0, 0, 1, 1], [], []>} : vector<2x32xf32>, vector<32x32xf32>, vector<2x32xf32> -> vector<2x32xf32>
    %11 = arith.addf %9, %10 : vector<2x32xf32>
    %12 = math.tanh %11 : vector<2x32xf32>
    %c0_10 = arith.constant 0 : index
    %c0_11 = arith.constant 0 : index
    %13 = vector.load %arg4[%c0_10, %c0_11] : memref<256x128xf32, #tpu.memory_space<vmem>>, vector<32x128xf32>
    %cst_12 = arith.constant dense<0.000000e+00> : vector<2x128xf32>
    %14 = tpu.matmul %12, %13, %cst_12 {dimension_numbers = #tpu.dot_dimension_numbers<[1], [0], [0], [1], [0, 0, 1, 1], [], []>} : vector<2x32xf32>, vector<32x128xf32>, vector<2x128xf32> -> vector<2x128xf32>
    %15 = arith.addf %8, %14 : vector<2x128xf32>
    %16 = vector.extract_strided_slice %6 {offsets = [2, 0], sizes = [2, 32], strides = [1, 1]} : vector<16x32xf32> to vector<2x32xf32>
    %cst_13 = arith.constant dense<0.000000e+00> : vector<2x32xf32>
    %17 = tpu.matmul %12, %0, %cst_13 {dimension_numbers = #tpu.dot_dimension_numbers<[1], [0], [0], [1], [0, 0, 1, 1], [], []>} : vector<2x32xf32>, vector<32x32xf32>, vector<2x32xf32> -> vector<2x32xf32>
    %18 = arith.addf %16, %17 : vector<2x32xf32>
    %19 = math.tanh %18 : vector<2x32xf32>
    %c32 = arith.constant 32 : index
    %c0_14 = arith.constant 0 : index
    %20 = vector.load %arg4[%c32, %c0_14] : memref<256x128xf32, #tpu.memory_space<vmem>>, vector<32x128xf32>
    %cst_15 = arith.constant dense<0.000000e+00> : vector<2x128xf32>
    %21 = tpu.matmul %19, %20, %cst_15 {dimension_numbers = #tpu.dot_dimension_numbers<[1], [0], [0], [1], [0, 0, 1, 1], [], []>} : vector<2x32xf32>, vector<32x128xf32>, vector<2x128xf32> -> vector<2x128xf32>
    %22 = arith.addf %15, %21 : vector<2x128xf32>
    %23 = vector.extract_strided_slice %6 {offsets = [4, 0], sizes = [2, 32], strides = [1, 1]} : vector<16x32xf32> to vector<2x32xf32>
    %cst_16 = arith.constant dense<0.000000e+00> : vector<2x32xf32>
    %24 = tpu.matmul %19, %0, %cst_16 {dimension_numbers = #tpu.dot_dimension_numbers<[1], [0], [0], [1], [0, 0, 1, 1], [], []>} : vector<2x32xf32>, vector<32x32xf32>, vector<2x32xf32> -> vector<2x32xf32>
    %25 = arith.addf %23, %24 : vector<2x32xf32>
    %26 = math.tanh %25 : vector<2x32xf32>
    %c64 = arith.constant 64 : index
    %c0_17 = arith.constant 0 : index
    %27 = vector.load %arg4[%c64, %c0_17] : memref<256x128xf32, #tpu.memory_space<vmem>>, vector<32x128xf32>
    %cst_18 = arith.constant dense<0.000000e+00> : vector<2x128xf32>
    %28 = tpu.matmul %26, %27, %cst_18 {dimension_numbers = #tpu.dot_dimension_numbers<[1], [0], [0], [1], [0, 0, 1, 1], [], []>} : vector<2x32xf32>, vector<32x128xf32>, vector<2x128xf32> -> vector<2x128xf32>
    %29 = arith.addf %22, %28 : vector<2x128xf32>
    %30 = vector.extract_strided_slice %6 {offsets = [6, 0], sizes = [2, 32], strides = [1, 1]} : vector<16x32xf32> to vector<2x32xf32>
    %cst_19 = arith.constant dense<0.000000e+00> : vector<2x32xf32>
    %31 = tpu.matmul %26, %0, %cst_19 {dimension_numbers = #tpu.dot_dimension_numbers<[1], [0], [0], [1], [0, 0, 1, 1], [], []>} : vector<2x32xf32>, vector<32x32xf32>, vector<2x32xf32> -> vector<2x32xf32>
    %32 = arith.addf %30, %31 : vector<2x32xf32>
    %33 = math.tanh %32 : vector<2x32xf32>
    %c96 = arith.constant 96 : index
    %c0_20 = arith.constant 0 : index
    %34 = vector.load %arg4[%c96, %c0_20] : memref<256x128xf32, #tpu.memory_space<vmem>>, vector<32x128xf32>
    %cst_21 = arith.constant dense<0.000000e+00> : vector<2x128xf32>
    %35 = tpu.matmul %33, %34, %cst_21 {dimension_numbers = #tpu.dot_dimension_numbers<[1], [0], [0], [1], [0, 0, 1, 1], [], []>} : vector<2x32xf32>, vector<32x128xf32>, vector<2x128xf32> -> vector<2x128xf32>
    %36 = arith.addf %29, %35 : vector<2x128xf32>
    %37 = vector.extract_strided_slice %6 {offsets = [8, 0], sizes = [2, 32], strides = [1, 1]} : vector<16x32xf32> to vector<2x32xf32>
    %cst_22 = arith.constant dense<0.000000e+00> : vector<2x32xf32>
    %38 = tpu.matmul %33, %0, %cst_22 {dimension_numbers = #tpu.dot_dimension_numbers<[1], [0], [0], [1], [0, 0, 1, 1], [], []>} : vector<2x32xf32>, vector<32x32xf32>, vector<2x32xf32> -> vector<2x32xf32>
    %39 = arith.addf %37, %38 : vector<2x32xf32>
    %40 = math.tanh %39 : vector<2x32xf32>
    %c128 = arith.constant 128 : index
    %c0_23 = arith.constant 0 : index
    %41 = vector.load %arg4[%c128, %c0_23] : memref<256x128xf32, #tpu.memory_space<vmem>>, vector<32x128xf32>
    %cst_24 = arith.constant dense<0.000000e+00> : vector<2x128xf32>
    %42 = tpu.matmul %40, %41, %cst_24 {dimension_numbers = #tpu.dot_dimension_numbers<[1], [0], [0], [1], [0, 0, 1, 1], [], []>} : vector<2x32xf32>, vector<32x128xf32>, vector<2x128xf32> -> vector<2x128xf32>
    %43 = arith.addf %36, %42 : vector<2x128xf32>
    %44 = vector.extract_strided_slice %6 {offsets = [10, 0], sizes = [2, 32], strides = [1, 1]} : vector<16x32xf32> to vector<2x32xf32>
    %cst_25 = arith.constant dense<0.000000e+00> : vector<2x32xf32>
    %45 = tpu.matmul %40, %0, %cst_25 {dimension_numbers = #tpu.dot_dimension_numbers<[1], [0], [0], [1], [0, 0, 1, 1], [], []>} : vector<2x32xf32>, vector<32x32xf32>, vector<2x32xf32> -> vector<2x32xf32>
    %46 = arith.addf %44, %45 : vector<2x32xf32>
    %47 = math.tanh %46 : vector<2x32xf32>
    %c160 = arith.constant 160 : index
    %c0_26 = arith.constant 0 : index
    %48 = vector.load %arg4[%c160, %c0_26] : memref<256x128xf32, #tpu.memory_space<vmem>>, vector<32x128xf32>
    %cst_27 = arith.constant dense<0.000000e+00> : vector<2x128xf32>
    %49 = tpu.matmul %47, %48, %cst_27 {dimension_numbers = #tpu.dot_dimension_numbers<[1], [0], [0], [1], [0, 0, 1, 1], [], []>} : vector<2x32xf32>, vector<32x128xf32>, vector<2x128xf32> -> vector<2x128xf32>
    %50 = arith.addf %43, %49 : vector<2x128xf32>
    %51 = vector.extract_strided_slice %6 {offsets = [12, 0], sizes = [2, 32], strides = [1, 1]} : vector<16x32xf32> to vector<2x32xf32>
    %cst_28 = arith.constant dense<0.000000e+00> : vector<2x32xf32>
    %52 = tpu.matmul %47, %0, %cst_28 {dimension_numbers = #tpu.dot_dimension_numbers<[1], [0], [0], [1], [0, 0, 1, 1], [], []>} : vector<2x32xf32>, vector<32x32xf32>, vector<2x32xf32> -> vector<2x32xf32>
    %53 = arith.addf %51, %52 : vector<2x32xf32>
    %54 = math.tanh %53 : vector<2x32xf32>
    %c192 = arith.constant 192 : index
    %c0_29 = arith.constant 0 : index
    %55 = vector.load %arg4[%c192, %c0_29] : memref<256x128xf32, #tpu.memory_space<vmem>>, vector<32x128xf32>
    %cst_30 = arith.constant dense<0.000000e+00> : vector<2x128xf32>
    %56 = tpu.matmul %54, %55, %cst_30 {dimension_numbers = #tpu.dot_dimension_numbers<[1], [0], [0], [1], [0, 0, 1, 1], [], []>} : vector<2x32xf32>, vector<32x128xf32>, vector<2x128xf32> -> vector<2x128xf32>
    %57 = arith.addf %50, %56 : vector<2x128xf32>
    %58 = vector.extract_strided_slice %6 {offsets = [14, 0], sizes = [2, 32], strides = [1, 1]} : vector<16x32xf32> to vector<2x32xf32>
    %cst_31 = arith.constant dense<0.000000e+00> : vector<2x32xf32>
    %59 = tpu.matmul %54, %0, %cst_31 {dimension_numbers = #tpu.dot_dimension_numbers<[1], [0], [0], [1], [0, 0, 1, 1], [], []>} : vector<2x32xf32>, vector<32x32xf32>, vector<2x32xf32> -> vector<2x32xf32>
    %60 = arith.addf %58, %59 : vector<2x32xf32>
    %61 = math.tanh %60 : vector<2x32xf32>
    %c224 = arith.constant 224 : index
    %c0_32 = arith.constant 0 : index
    %62 = vector.load %arg4[%c224, %c0_32] : memref<256x128xf32, #tpu.memory_space<vmem>>, vector<32x128xf32>
    %cst_33 = arith.constant dense<0.000000e+00> : vector<2x128xf32>
    %63 = tpu.matmul %61, %62, %cst_33 {dimension_numbers = #tpu.dot_dimension_numbers<[1], [0], [0], [1], [0, 0, 1, 1], [], []>} : vector<2x32xf32>, vector<32x128xf32>, vector<2x128xf32> -> vector<2x128xf32>
    %64 = arith.addf %57, %63 : vector<2x128xf32>
    %c0_34 = arith.constant 0 : index
    %c0_35 = arith.constant 0 : index
    %65 = vector.load %arg5[%c0_34, %c0_35] : memref<1x128xf32, #tpu.memory_space<vmem>>, vector<1x128xf32>
    %66 = vector.broadcast %65 : vector<1x128xf32> to vector<2x128xf32>
    %67 = arith.addf %64, %66 : vector<2x128xf32>
    %68 = arith.negf %67 : vector<2x128xf32>
    %69 = math.exp %68 : vector<2x128xf32>
    %cst_36 = arith.constant 1.000000e+00 : f32
    %70 = vector.broadcast %cst_36 : f32 to vector<2x128xf32>
    %71 = arith.addf %70, %69 : vector<2x128xf32>
    %72 = arith.divf %70, %71 : vector<2x128xf32>
    %c0_37 = arith.constant 0 : index
    %c0_38 = arith.constant 0 : index
    %73 = vector.load %arg6[%c0_37, %c0_38] : memref<2x128xf32, #tpu.memory_space<vmem>>, vector<2x128xf32>
    tpu.vector_store %arg6[%c0_37, %c0_38], %72 {strides = array<i32>} : memref<2x128xf32, #tpu.memory_space<vmem>>, vector<2x128xf32>,
    return
  }
}

</mosaic_0001>

<llo_original>
// kernel: tpu_custom_call.1
$region0: #{tpu_custom_call.1}
  #allocation0 [shape = 'u32[]', space=smem, size = 0x4, offset = 0x4, fixed_abs, tag = 'smem constant byte address 0x4 - core index']
  #allocation1 [shape = 'u32[72,128]{1,0:T(1,128)}', space=vmem, size = 0x9000, scoped, tag = 'internal scratch']
  %s0 = inlined_call_operand.vmem [shape: f32[16,4], index: 0, kind: input, shape index: {}]
  %s1 = inlined_call_operand.vmem [shape: f32[4,32], index: 1, kind: input, shape index: {}]
  %s2 = inlined_call_operand.hbm [shape: f32[32,32], index: 2, kind: input, shape index: {}]
  %s3 = inlined_call_operand.vmem [shape: f32[1,32], index: 3, kind: input, shape index: {}]
  %s4 = inlined_call_operand.hbm [shape: f32[256,128], index: 4, kind: input, shape index: {}]
  %s5 = inlined_call_operand.vmem [shape: f32[1,128], index: 5, kind: input, shape index: {}]
  %s6 = inlined_call_operand.hbm [shape: f32[2,128], index: 6, kind: output, shape index: {}]
  %s7 = sld [smem:[#allocation0]]
  $region42: #{tpu_custom_call.1} parent=0
    _
  %s9 = ssub.s32 1, %s7
  %s10 = scalar_select 0, %s9, %s7
  $region1: #{tpu_custom_call.1} parent=0
    #allocation2 [shape = 'u8[16384]{0}', space=vmem, size = 0x4000, scoped, tag = 'input window, operand 2, single buffered']
    #allocation3 [shape = 's32[1]{0}', space=sflag, size = 0x4, scoped, tag = 'scoped memory for tpu_custom_call.1']
    #allocation4 [shape = 's32[1]{0}', space=sflag, size = 0x4, scoped, tag = 'scoped memory for tpu_custom_call.1']
    #allocation5 [shape = 'u8[131072]{0}', space=vmem, size = 0x20000, scoped, tag = 'input window, operand 4, single buffered']
    #allocation6 [shape = 's32[1]{0}', space=sflag, size = 0x4, scoped, tag = 'scoped memory for tpu_custom_call.1']
    #allocation7 [shape = 'u8[1024]{0}', space=vmem, size = 0x400, scoped, tag = 'output window, operand 0, single buffered']
    %11 = vsyncpa [#allocation3], 0
    %12 = vsyncpa [#allocation6], 0
    %13 = vsyncpa [#allocation4], 0
    // Predicated region
    $region2: #{tpu_custom_call.1} parent=1 // pred_check
      _
    $region3: #{tpu_custom_call.1} parent=1 // pred_check_branch
      %15 = sbr.rel (0) target = $region5
    $region4: #{tpu_custom_call.1} parent=1 // pred_region
      _
    $region5: #{tpu_custom_call.1} parent=1 // pred_fallthru
      _
    // Predicated region
    $region6: #{tpu_custom_call.1} parent=1 // pred_check
      _
    $region7: #{tpu_custom_call.1} parent=1 // pred_check_branch
      %17 = sbr.rel (0) target = $region9
    $region8: #{tpu_custom_call.1} parent=1 // pred_region
      _
    $region9: #{tpu_custom_call.1} parent=1 // pred_fallthru
      _
    // Predicated region
    $region10: #{tpu_custom_call.1} parent=1 // pred_check
      _
    $region11: #{tpu_custom_call.1} parent=1 // pred_check_branch
      %19 = sbr.rel (0) target = $region13
    $region12: #{tpu_custom_call.1} parent=1 // pred_region
      %21 = vsyncadd [#allocation3], 0
      %s22 = sshll.u32 %s2, 4
      %s23 = int_to_ptr.hbm [resolvable:$true] %s22
      %s24 = sshll.u32 [#allocation2], 4
      %s25 = int_to_ptr.vmem [resolvable:$true] %s24
      %30 = dma.hbm_to_vmem [thread:$0]  %s23, 512, %s25, [#allocation3], 128, 128, 8
    $region13: #{tpu_custom_call.1} parent=1 // pred_fallthru
      _
    // Predicated region
    $region14: #{tpu_custom_call.1} parent=1 // pred_check
      _
    $region15: #{tpu_custom_call.1} parent=1 // pred_check_branch
      %32 = sbr.rel (0) target = $region17
    $region16: #{tpu_custom_call.1} parent=1 // pred_region
      _
    $region17: #{tpu_custom_call.1} parent=1 // pred_fallthru
      _
    // Predicated region
    $region18: #{tpu_custom_call.1} parent=1 // pred_check
      _
    $region19: #{tpu_custom_call.1} parent=1 // pred_check_branch
      %34 = sbr.rel (0) target = $region21
    $region20: #{tpu_custom_call.1} parent=1 // pred_region
      %36 = vsyncadd [#allocation6], 0
      %s37 = sshll.u32 %s4, 4
      %s38 = int_to_ptr.hbm [resolvable:$true] %s37
      %s39 = sshll.u32 [#allocation5], 4
      %s40 = int_to_ptr.vmem [resolvable:$true] %s39
      %45 = dma.hbm_to_vmem [thread:$0]  %s38, 4096, %s40, [#allocation6], 128, 128, 8
    $region21: #{tpu_custom_call.1} parent=1 // pred_fallthru
      _
    // Predicated region
    $region22: #{tpu_custom_call.1} parent=1 // pred_check
      _
    $region23: #{tpu_custom_call.1} parent=1 // pred_check_branch
      %47 = sbr.rel (0) target = $region25
    $region24: #{tpu_custom_call.1} parent=1 // pred_region
      _
    $region25: #{tpu_custom_call.1} parent=1 // pred_fallthru
      _
    // Predicated region
    $region26: #{tpu_custom_call.1} parent=1 // pred_check
      _
    $region27: #{tpu_custom_call.1} parent=1 // pred_check_branch
      %49 = sbr.rel (0) target = $region29
    $region28: #{tpu_custom_call.1} parent=1 // pred_region
      %51 = dma.done [#allocation3], 512
    $region29: #{tpu_custom_call.1} parent=1 // pred_fallthru
      _
    // Predicated region
    $region30: #{tpu_custom_call.1} parent=1 // pred_check
      _
    $region31: #{tpu_custom_call.1} parent=1 // pred_check_branch
      %53 = sbr.rel (0) target = $region33
    $region32: #{tpu_custom_call.1} parent=1 // pred_region
      %55 = dma.done [#allocation6], 4096
    $region33: #{tpu_custom_call.1} parent=1 // pred_fallthru
      _
    %v56 = vld [vmem:[#allocation2] sm:$0xff]
    %v57 = vld [vmem:[#allocation2 + $0x8] sm:$0xff]
    %v58 = vld [vmem:[#allocation2 + $0x10] sm:$0xff]
    %v59 = vld [vmem:[#allocation2 + $0x18] sm:$0xff]
    %v60 = vld [vmem:[%s0] sm:$0xff]
    %v61 = vld [vmem:[%s0 + $0x8] sm:$0xff]
    %v62 = vld [vmem:[%s1] sm:$0xf]
    %v63 = vld [vmem:[%s3] sm:$0x1]
    %v65 = vperm.slane %v63, 0
    %vm67 = vcmask 31744
    %v69 = vsel %vm67, %v60, 0
    %v72 = vsel %vm67, %v61, 0
    %vm74 = vcmask 1043456
    %v76 = vsel %vm74, %v62, 0
    %78 = vmatpush.msra.mxu0 0.0
    %79 = vmatpush.msra.mxu0 0.0
    %80 = vmatpush.msra.mxu0 0.0
    %81 = vmatpush.msra.mxu0 0.0
    %82 = vmatpush.msra.mxu0 0.0
    %83 = vmatpush.msra.mxu0 0.0
    %84 = vmatpush.msra.mxu0 0.0
    %85 = vmatpush.msra.mxu0 0.0
    %86 = vmatpush.msra.mxu0 0.0
    %87 = vmatpush.msra.mxu0 0.0
    %88 = vmatpush.msra.mxu0 0.0
    %89 = vmatpush.msra.mxu0 0.0
    %90 = vmatpush.msra.mxu0 0.0
    %91 = vmatpush.msra.mxu0 0.0
    %92 = vmatpush.msra.mxu0 0.0
    %93 = vmatpush.msra.mxu0 %v76
    %94 = vmatmul.f32.gmra.mxu0 %v69
    %v95 = vpop.f32.mrf.mxu0
    %v96 = vadd.f32 %v65, %v95
    %97 = vmatmul.f32.gmra.mxu0 %v72
    %v98 = vpop.f32.mrf.mxu0
    %v99 = vadd.f32 %v65, %v98
    %100 = vdwg.mxu0
    %vm101 = vcmask 261120
    %v103 = vsel %vm101, 0.0, 0
    %105 = vmatpush.msra.mxu0 0.0
    %106 = vmatpush.msra.mxu0 0.0
    %107 = vmatpush.msra.mxu0 0.0
    %108 = vmatpush.msra.mxu0 0.0
    %109 = vmatpush.msra.mxu0 0.0
    %110 = vmatpush.msra.mxu0 0.0
    %111 = vmatpush.msra.mxu0 0.0
    %112 = vmatpush.msra.mxu0 0.0
    %113 = vmatpush.msra.mxu0 0.0
    %114 = vmatpush.msra.mxu0 0.0
    %115 = vmatpush.msra.mxu0 0.0
    %116 = vmatpush.msra.mxu0 0.0
    %117 = vmatpush.msra.mxu0 %v59
    %118 = vmatpush.msra.mxu0 %v58
    %119 = vmatpush.msra.mxu0 %v57
    %120 = vmatpush.msra.mxu0 %v56
    %121 = vmatmul.f32.gmra.mxu0 %v103
    %v122 = vpop.f32.mrf.mxu0
    %v123 = vadd.f32 0.0, %v122
    %124 = vdwg.mxu0
    %v125 = vadd.f32 %v96, %v123
    %v126 = vtanh.pop %v125
    %v127 = vld [vmem:[#allocation5] sm:$0xff]
    %v128 = vld [vmem:[#allocation5 + $0x8] sm:$0xff]
    %v129 = vld [vmem:[#allocation5 + $0x10] sm:$0xff]
    %v130 = vld [vmem:[#allocation5 + $0x18] sm:$0xff]
    %v132 = vsel %vm101, %v126, 0
    %134 = vmatpush.msra.mxu0 0.0
    %135 = vmatpush.msra.mxu0 0.0
    %136 = vmatpush.msra.mxu0 0.0
    %137 = vmatpush.msra.mxu0 0.0
    %138 = vmatpush.msra.mxu0 0.0
    %139 = vmatpush.msra.mxu0 0.0
    %140 = vmatpush.msra.mxu0 0.0
    %141 = vmatpush.msra.mxu0 0.0
    %142 = vmatpush.msra.mxu0 0.0
    %143 = vmatpush.msra.mxu0 0.0
    %144 = vmatpush.msra.mxu0 0.0
    %145 = vmatpush.msra.mxu0 0.0
    %146 = vmatpush.msra.mxu0 %v59
    %147 = vmatpush.msra.mxu0 %v58
    %148 = vmatpush.msra.mxu0 %v57
    %149 = vmatpush.msra.mxu0 %v56
    %150 = vmatmul.f32.gmra.mxu0 %v132
    %v151 = vpop.f32.mrf.mxu0
    %v152 = vadd.f32 0.0, %v151
    %153 = vdwg.mxu0
    %v155 = vrot.slane %v152, 6
    %v157 = vadd.f32 %v96, %v155
    %v158 = vtanh.pop %v157
    %v159 = vld [vmem:[#allocation5 + $0x20] sm:$0xff]
    %v160 = vld [vmem:[#allocation5 + $0x28] sm:$0xff]
    %v161 = vld [vmem:[#allocation5 + $0x30] sm:$0xff]
    %v162 = vld [vmem:[#allocation5 + $0x38] sm:$0xff]
    %v164 = vrot.slane %v158, 2
    %v165 = vsel %vm101, %v164, 0
    %167 = vmatpush.msra.mxu0 0.0
    %168 = vmatpush.msra.mxu0 0.0
    %169 = vmatpush.msra.mxu0 0.0
    %170 = vmatpush.msra.mxu0 0.0
    %171 = vmatpush.msra.mxu0 0.0
    %172 = vmatpush.msra.mxu0 0.0
    %173 = vmatpush.msra.mxu0 0.0
    %174 = vmatpush.msra.mxu0 0.0
    %175 = vmatpush.msra.mxu0 0.0
    %176 = vmatpush.msra.mxu0 0.0
    %177 = vmatpush.msra.mxu0 0.0
    %178 = vmatpush.msra.mxu0 0.0
    %179 = vmatpush.msra.mxu0 %v162
    %180 = vmatpush.msra.mxu0 %v161
    %181 = vmatpush.msra.mxu0 %v160
    %182 = vmatpush.msra.mxu0 %v159
    %183 = vmatmul.f32.gmra.mxu0 %v165
    %v184 = vpop.f32.mrf.mxu0
    %v185 = vadd.f32 0.0, %v184
    %186 = vdwg.mxu0
    %187 = vmatpush.msra.mxu0 0.0
    %188 = vmatpush.msra.mxu0 0.0
    %189 = vmatpush.msra.mxu0 0.0
    %190 = vmatpush.msra.mxu0 0.0
    %191 = vmatpush.msra.mxu0 0.0
    %192 = vmatpush.msra.mxu0 0.0
    %193 = vmatpush.msra.mxu0 0.0
    %194 = vmatpush.msra.mxu0 0.0
    %195 = vmatpush.msra.mxu0 0.0
    %196 = vmatpush.msra.mxu0 0.0
    %197 = vmatpush.msra.mxu0 0.0
    %198 = vmatpush.msra.mxu0 0.0
    %199 = vmatpush.msra.mxu0 %v130
    %200 = vmatpush.msra.mxu0 %v129
    %201 = vmatpush.msra.mxu0 %v128
    %202 = vmatpush.msra.mxu0 %v127
    %203 = vmatmul.f32.gmra.mxu0 %v132
    %v204 = vpop.f32.mrf.mxu0
    %v205 = vadd.f32 %v185, %v204
    %206 = vdwg.mxu0
    %207 = vmatpush.msra.mxu0 0.0
    %208 = vmatpush.msra.mxu0 0.0
    %209 = vmatpush.msra.mxu0 0.0
    %210 = vmatpush.msra.mxu0 0.0
    %211 = vmatpush.msra.mxu0 0.0
    %212 = vmatpush.msra.mxu0 0.0
    %213 = vmatpush.msra.mxu0 0.0
    %214 = vmatpush.msra.mxu0 0.0
    %215 = vmatpush.msra.mxu0 0.0
    %216 = vmatpush.msra.mxu0 0.0
    %217 = vmatpush.msra.mxu0 0.0
    %218 = vmatpush.msra.mxu0 0.0
    %219 = vmatpush.msra.mxu0 %v59
    %220 = vmatpush.msra.mxu0 %v58
    %221 = vmatpush.msra.mxu0 %v57
    %222 = vmatpush.msra.mxu0 %v56
    %223 = vmatmul.f32.gmra.mxu0 %v165
    %v224 = vpop.f32.mrf.mxu0
    %v225 = vadd.f32 0.0, %v224
    %226 = vdwg.mxu0
    %v228 = vrot.slane %v225, 4
    %v230 = vadd.f32 %v96, %v228
    %v231 = vtanh.pop %v230
    %v232 = vld [vmem:[#allocation5 + $0x40] sm:$0xff]
    %v233 = vld [vmem:[#allocation5 + $0x48] sm:$0xff]
    %v234 = vld [vmem:[#allocation5 + $0x50] sm:$0xff]
    %v235 = vld [vmem:[#allocation5 + $0x58] sm:$0xff]
    %v237 = vrot.slane %v231, 4
    %v238 = vsel %vm101, %v237, 0
    %240 = vmatpush.msra.mxu0 0.0
    %241 = vmatpush.msra.mxu0 0.0
    %242 = vmatpush.msra.mxu0 0.0
    %243 = vmatpush.msra.mxu0 0.0
    %244 = vmatpush.msra.mxu0 0.0
    %245 = vmatpush.msra.mxu0 0.0
    %246 = vmatpush.msra.mxu0 0.0
    %247 = vmatpush.msra.mxu0 0.0
    %248 = vmatpush.msra.mxu0 0.0
    %249 = vmatpush.msra.mxu0 0.0
    %250 = vmatpush.msra.mxu0 0.0
    %251 = vmatpush.msra.mxu0 0.0
    %252 = vmatpush.msra.mxu0 %v235
    %253 = vmatpush.msra.mxu0 %v234
    %254 = vmatpush.msra.mxu0 %v233
    %255 = vmatpush.msra.mxu0 %v232
    %256 = vmatmul.f32.gmra.mxu0 %v238
    %v257 = vpop.f32.mrf.mxu0
    %v258 = vadd.f32 0.0, %v257
    %259 = vdwg.mxu0
    %v260 = vadd.f32 %v205, %v258
    %261 = vmatpush.msra.mxu0 0.0
    %262 = vmatpush.msra.mxu0 0.0
    %263 = vmatpush.msra.mxu0 0.0
    %264 = vmatpush.msra.mxu0 0.0
    %265 = vmatpush.msra.mxu0 0.0
    %266 = vmatpush.msra.mxu0 0.0
    %267 = vmatpush.msra.mxu0 0.0
    %268 = vmatpush.msra.mxu0 0.0
    %269 = vmatpush.msra.mxu0 0.0
    %270 = vmatpush.msra.mxu0 0.0
    %271 = vmatpush.msra.mxu0 0.0
    %272 = vmatpush.msra.mxu0 0.0
    %273 = vmatpush.msra.mxu0 %v59
    %274 = vmatpush.msra.mxu0 %v58
    %275 = vmatpush.msra.mxu0 %v57
    %276 = vmatpush.msra.mxu0 %v56
    %277 = vmatmul.f32.gmra.mxu0 %v238
    %v278 = vpop.f32.mrf.mxu0
    %v279 = vadd.f32 0.0, %v278
    %280 = vdwg.mxu0
    %v282 = vrot.slane %v279, 2
    %v284 = vadd.f32 %v96, %v282
    %v285 = vtanh.pop %v284
    %v286 = vld [vmem:[#allocation5 + $0x60] sm:$0xff]
    %v287 = vld [vmem:[#allocation5 + $0x68] sm:$0xff]
    %v288 = vld [vmem:[#allocation5 + $0x70] sm:$0xff]
    %v289 = vld [vmem:[#allocation5 + $0x78] sm:$0xff]
    %v291 = vrot.slane %v285, 6
    %v292 = vsel %vm101, %v291, 0
    %294 = vmatpush.msra.mxu0 0.0
    %295 = vmatpush.msra.mxu0 0.0
    %296 = vmatpush.msra.mxu0 0.0
    %297 = vmatpush.msra.mxu0 0.0
    %298 = vmatpush.msra.mxu0 0.0
    %299 = vmatpush.msra.mxu0 0.0
    %300 = vmatpush.msra.mxu0 0.0
    %301 = vmatpush.msra.mxu0 0.0
    %302 = vmatpush.msra.mxu0 0.0
    %303 = vmatpush.msra.mxu0 0.0
    %304 = vmatpush.msra.mxu0 0.0
    %305 = vmatpush.msra.mxu0 0.0
    %306 = vmatpush.msra.mxu0 %v289
    %307 = vmatpush.msra.mxu0 %v288
    %308 = vmatpush.msra.mxu0 %v287
    %309 = vmatpush.msra.mxu0 %v286
    %310 = vmatmul.f32.gmra.mxu0 %v292
    %v311 = vpop.f32.mrf.mxu0
    %v312 = vadd.f32 0.0, %v311
    %313 = vdwg.mxu0
    %v314 = vadd.f32 %v260, %v312
    %315 = vmatpush.msra.mxu0 0.0
    %316 = vmatpush.msra.mxu0 0.0
    %317 = vmatpush.msra.mxu0 0.0
    %318 = vmatpush.msra.mxu0 0.0
    %319 = vmatpush.msra.mxu0 0.0
    %320 = vmatpush.msra.mxu0 0.0
    %321 = vmatpush.msra.mxu0 0.0
    %322 = vmatpush.msra.mxu0 0.0
    %323 = vmatpush.msra.mxu0 0.0
    %324 = vmatpush.msra.mxu0 0.0
    %325 = vmatpush.msra.mxu0 0.0
    %326 = vmatpush.msra.mxu0 0.0
    %327 = vmatpush.msra.mxu0 %v59
    %328 = vmatpush.msra.mxu0 %v58
    %329 = vmatpush.msra.mxu0 %v57
    %330 = vmatpush.msra.mxu0 %v56
    %331 = vmatmul.f32.gmra.mxu0 %v292
    %v332 = vpop.f32.mrf.mxu0
    %v333 = vadd.f32 0.0, %v332
    %334 = vdwg.mxu0
    %v335 = vadd.f32 %v99, %v333
    %v336 = vtanh.pop %v335
    %v337 = vld [vmem:[#allocation5 + $0x80] sm:$0xff]
    %v338 = vld [vmem:[#allocation5 + $0x88] sm:$0xff]
    %v339 = vld [vmem:[#allocation5 + $0x90] sm:$0xff]
    %v340 = vld [vmem:[#allocation5 + $0x98] sm:$0xff]
    %v342 = vsel %vm101, %v336, 0
    %344 = vmatpush.msra.mxu0 0.0
    %345 = vmatpush.msra.mxu0 0.0
    %346 = vmatpush.msra.mxu0 0.0
    %347 = vmatpush.msra.mxu0 0.0
    %348 = vmatpush.msra.mxu0 0.0
    %349 = vmatpush.msra.mxu0 0.0
    %350 = vmatpush.msra.mxu0 0.0
    %351 = vmatpush.msra.mxu0 0.0
    %352 = vmatpush.msra.mxu0 0.0
    %353 = vmatpush.msra.mxu0 0.0
    %354 = vmatpush.msra.mxu0 0.0
    %355 = vmatpush.msra.mxu0 0.0
    %356 = vmatpush.msra.mxu0 %v340
    %357 = vmatpush.msra.mxu0 %v339
    %358 = vmatpush.msra.mxu0 %v338
    %359 = vmatpush.msra.mxu0 %v337
    %360 = vmatmul.f32.gmra.mxu0 %v342
    %v361 = vpop.f32.mrf.mxu0
    %v362 = vadd.f32 0.0, %v361
    %363 = vdwg.mxu0
    %v364 = vadd.f32 %v314, %v362
    %365 = vmatpush.msra.mxu0 0.0
    %366 = vmatpush.msra.mxu0 0.0
    %367 = vmatpush.msra.mxu0 0.0
    %368 = vmatpush.msra.mxu0 0.0
    %369 = vmatpush.msra.mxu0 0.0
    %370 = vmatpush.msra.mxu0 0.0
    %371 = vmatpush.msra.mxu0 0.0
    %372 = vmatpush.msra.mxu0 0.0
    %373 = vmatpush.msra.mxu0 0.0
    %374 = vmatpush.msra.mxu0 0.0
    %375 = vmatpush.msra.mxu0 0.0
    %376 = vmatpush.msra.mxu0 0.0
    %377 = vmatpush.msra.mxu0 %v59
    %378 = vmatpush.msra.mxu0 %v58
    %379 = vmatpush.msra.mxu0 %v57
    %380 = vmatpush.msra.mxu0 %v56
    %381 = vmatmul.f32.gmra.mxu0 %v342
    %v382 = vpop.f32.mrf.mxu0
    %v383 = vadd.f32 0.0, %v382
    %384 = vdwg.mxu0
    %v386 = vrot.slane %v383, 6
    %v388 = vadd.f32 %v99, %v386
    %v389 = vtanh.pop %v388
    %v390 = vld [vmem:[#allocation5 + $0xa0] sm:$0xff]
    %v391 = vld [vmem:[#allocation5 + $0xa8] sm:$0xff]
    %v392 = vld [vmem:[#allocation5 + $0xb0] sm:$0xff]
    %v393 = vld [vmem:[#allocation5 + $0xb8] sm:$0xff]
    %v395 = vrot.slane %v389, 2
    %v396 = vsel %vm101, %v395, 0
    %398 = vmatpush.msra.mxu0 0.0
    %399 = vmatpush.msra.mxu0 0.0
    %400 = vmatpush.msra.mxu0 0.0
    %401 = vmatpush.msra.mxu0 0.0
    %402 = vmatpush.msra.mxu0 0.0
    %403 = vmatpush.msra.mxu0 0.0
    %404 = vmatpush.msra.mxu0 0.0
    %405 = vmatpush.msra.mxu0 0.0
    %406 = vmatpush.msra.mxu0 0.0
    %407 = vmatpush.msra.mxu0 0.0
    %408 = vmatpush.msra.mxu0 0.0
    %409 = vmatpush.msra.mxu0 0.0
    %410 = vmatpush.msra.mxu0 %v393
    %411 = vmatpush.msra.mxu0 %v392
    %412 = vmatpush.msra.mxu0 %v391
    %413 = vmatpush.msra.mxu0 %v390
    %414 = vmatmul.f32.gmra.mxu0 %v396
    %v415 = vpop.f32.mrf.mxu0
    %v416 = vadd.f32 0.0, %v415
    %417 = vdwg.mxu0
    %v418 = vadd.f32 %v364, %v416
    %419 = vmatpush.msra.mxu0 0.0
    %420 = vmatpush.msra.mxu0 0.0
    %421 = vmatpush.msra.mxu0 0.0
    %422 = vmatpush.msra.mxu0 0.0
    %423 = vmatpush.msra.mxu0 0.0
    %424 = vmatpush.msra.mxu0 0.0
    %425 = vmatpush.msra.mxu0 0.0
    %426 = vmatpush.msra.mxu0 0.0
    %427 = vmatpush.msra.mxu0 0.0
    %428 = vmatpush.msra.mxu0 0.0
    %429 = vmatpush.msra.mxu0 0.0
    %430 = vmatpush.msra.mxu0 0.0
    %431 = vmatpush.msra.mxu0 %v59
    %432 = vmatpush.msra.mxu0 %v58
    %433 = vmatpush.msra.mxu0 %v57
    %434 = vmatpush.msra.mxu0 %v56
    %435 = vmatmul.f32.gmra.mxu0 %v396
    %v436 = vpop.f32.mrf.mxu0
    %v437 = vadd.f32 0.0, %v436
    %438 = vdwg.mxu0
    %v440 = vrot.slane %v437, 4
    %v442 = vadd.f32 %v99, %v440
    %v443 = vtanh.pop %v442
    %v444 = vld [vmem:[#allocation5 + $0xc0] sm:$0xff]
    %v445 = vld [vmem:[#allocation5 + $0xc8] sm:$0xff]
    %v446 = vld [vmem:[#allocation5 + $0xd0] sm:$0xff]
    %v447 = vld [vmem:[#allocation5 + $0xd8] sm:$0xff]
    %v449 = vrot.slane %v443, 4
    %v450 = vsel %vm101, %v449, 0
    %452 = vmatpush.msra.mxu0 0.0
    %453 = vmatpush.msra.mxu0 0.0
    %454 = vmatpush.msra.mxu0 0.0
    %455 = vmatpush.msra.mxu0 0.0
    %456 = vmatpush.msra.mxu0 0.0
    %457 = vmatpush.msra.mxu0 0.0
    %458 = vmatpush.msra.mxu0 0.0
    %459 = vmatpush.msra.mxu0 0.0
    %460 = vmatpush.msra.mxu0 0.0
    %461 = vmatpush.msra.mxu0 0.0
    %462 = vmatpush.msra.mxu0 0.0
    %463 = vmatpush.msra.mxu0 0.0
    %464 = vmatpush.msra.mxu0 %v447
    %465 = vmatpush.msra.mxu0 %v446
    %466 = vmatpush.msra.mxu0 %v445
    %467 = vmatpush.msra.mxu0 %v444
    %468 = vmatmul.f32.gmra.mxu0 %v450
    %v469 = vpop.f32.mrf.mxu0
    %v470 = vadd.f32 0.0, %v469
    %471 = vdwg.mxu0
    %v472 = vadd.f32 %v418, %v470
    %473 = vmatpush.msra.mxu0 0.0
    %474 = vmatpush.msra.mxu0 0.0
    %475 = vmatpush.msra.mxu0 0.0
    %476 = vmatpush.msra.mxu0 0.0
    %477 = vmatpush.msra.mxu0 0.0
    %478 = vmatpush.msra.mxu0 0.0
    %479 = vmatpush.msra.mxu0 0.0
    %480 = vmatpush.msra.mxu0 0.0
    %481 = vmatpush.msra.mxu0 0.0
    %482 = vmatpush.msra.mxu0 0.0
    %483 = vmatpush.msra.mxu0 0.0
    %484 = vmatpush.msra.mxu0 0.0
    %485 = vmatpush.msra.mxu0 %v59
    %486 = vmatpush.msra.mxu0 %v58
    %487 = vmatpush.msra.mxu0 %v57
    %488 = vmatpush.msra.mxu0 %v56
    %489 = vmatmul.f32.gmra.mxu0 %v450
    %v490 = vpop.f32.mrf.mxu0
    %v491 = vadd.f32 0.0, %v490
    %492 = vdwg.mxu0
    %v494 = vrot.slane %v491, 2
    %v496 = vadd.f32 %v99, %v494
    %v497 = vtanh.pop %v496
    %v498 = vld [vmem:[#allocation5 + $0xe0] sm:$0xff]
    %v499 = vld [vmem:[#allocation5 + $0xe8] sm:$0xff]
    %v500 = vld [vmem:[#allocation5 + $0xf0] sm:$0xff]
    %v501 = vld [vmem:[#allocation5 + $0xf8] sm:$0xff]
    %v503 = vrot.slane %v497, 6
    %v504 = vsel %vm101, %v503, 0
    %506 = vmatpush.msra.mxu0 0.0
    %507 = vmatpush.msra.mxu0 0.0
    %508 = vmatpush.msra.mxu0 0.0
    %509 = vmatpush.msra.mxu0 0.0
    %510 = vmatpush.msra.mxu0 0.0
    %511 = vmatpush.msra.mxu0 0.0
    %512 = vmatpush.msra.mxu0 0.0
    %513 = vmatpush.msra.mxu0 0.0
    %514 = vmatpush.msra.mxu0 0.0
    %515 = vmatpush.msra.mxu0 0.0
    %516 = vmatpush.msra.mxu0 0.0
    %517 = vmatpush.msra.mxu0 0.0
    %518 = vmatpush.msra.mxu0 %v501
    %519 = vmatpush.msra.mxu0 %v500
    %520 = vmatpush.msra.mxu0 %v499
    %521 = vmatpush.msra.mxu0 %v498
    %522 = vmatmul.f32.gmra.mxu0 %v504
    %v523 = vpop.f32.mrf.mxu0
    %v524 = vadd.f32 0.0, %v523
    %525 = vdwg.mxu0
    %v526 = vadd.f32 %v472, %v524
    %v527 = vld [vmem:[%s5] sm:$0x1]
    %v529 = vperm.slane %v527, 0
    %v531 = vadd.f32 %v526, %v529
    %v532 = vxor.u32 %v531, 2147483648
    %v533 = vmul.f32 %v532, 1.442695
    %v534 = vpow.pop %v533
    %v535 = vadd.f32 %v534, 1.0
    %v536 = vrcp.pop %v535
    %v537 = vmul.f32 %v535, %v536
    %v538 = vsub.f32 1.0, %v537
    %v539 = vmul.f32 %v536, %v538
    %v540 = vadd.f32 %v536, %v539
    %vm541 = vweird.f32 %v535
    %vm542 = vweird.f32 %v536
    %vm543 = vmor %vm541, %vm542
    %v544 = vsel %vm543, %v536, %v540
    %v545 = vand.u32 2147483647, %v535
    %vm546 = vcmp.eq.f32.partialorder %v545, 8.507059e+37
    %v547 = vand.u32 %v535, 2147483648
    %v548 = vor.u32 1.1754944e-38, %v547
    %v549 = vsel %vm546, %v548, %v544
    %v550 = vmul.f32 1.0, %v549
    %551 = vst [vmem:[#allocation7] sm:$0x3] %v550
    // Predicated region
    $region34: #{tpu_custom_call.1} parent=1 // pred_check
      _
    $region35: #{tpu_custom_call.1} parent=1 // pred_check_branch
      %553 = sbr.rel (0) target = $region37
    $region36: #{tpu_custom_call.1} parent=1 // pred_region
      %555 = vsyncadd [#allocation4], 0
      %s557 = sshll.u32 [#allocation7], 4
      %s558 = int_to_ptr.vmem [resolvable:$true] %s557
      %s559 = sshll.u32 %s6, 4
      %s560 = int_to_ptr.hbm [resolvable:$true] %s559
      %562 = dma.vmem_to_hbm [thread:$0]  %s558, 32, %s560, [#allocation4]
    $region37: #{tpu_custom_call.1} parent=1 // pred_fallthru
      _
    // Predicated region
    $region38: #{tpu_custom_call.1} parent=1 // pred_check
      _
    $region39: #{tpu_custom_call.1} parent=1 // pred_check_branch
      %564 = sbr.rel (0) target = $region41
    $region40: #{tpu_custom_call.1} parent=1 // pred_region
      %566 = dma.done [#allocation4], 32
    $region41: #{tpu_custom_call.1} parent=1 // pred_fallthru
      _
    %567 = vsyncpa [#allocation3], 1
    %568 = vsyncpa [#allocation6], 1
    %569 = vsyncpa [#allocation4], 1

</llo_original>
